<compile_context>
chip_gen: v7x
topology: tpu7x:2x2x1
jax: 0.10.0
libtpu: 0.0.40
codegen_flags: <defaults>
</compile_context>

<pallas_src>
import jax
import jax.numpy as jnp
from jax.experimental import pallas as pl
from jax.experimental.pallas import tpu as pltpu


def grn_kernel(x_ref, gamma_ref, beta_ref, o_ref):
    # x_ref / o_ref: (TR, Lp)   gamma_ref / beta_ref: (TR, 1)
    xf = x_ref[...].astype(jnp.float32)
    ssq = jnp.sum(xf * xf, axis=-1, keepdims=True)          # (TR, 1) f32
    gx = jnp.sqrt(ssq)                                      # (TR, 1)
    nx = gx / (gx + 1e-6)                                   # exact divide (tiny tensor)

    scale = gamma_ref[...].astype(jnp.float32) * nx + 1.0   # (TR, 1)
    beta = beta_ref[...].astype(jnp.float32)                # (TR, 1)

    # Fused epilogue: gamma*(x*nx) + beta + x == x*(gamma*nx + 1) + beta.
    # Re-read x from VMEM to keep the f32 live range short; cast once at store.
    o_ref[...] = (x_ref[...].astype(jnp.float32) * scale + beta).astype(o_ref.dtype)


def _round_up(a, b):
    return (a + b - 1) // b * b


def grn_forward(x, gamma, beta, *, block_budget_bytes=None, vmem_limit_bytes=None):
    """x: (N, C, H, W); gamma, beta: (1, C, 1, 1). Returns (N, C, H, W)."""
    N, C, H, W = x.shape
    R = N * C
    L = H * W
    itemsize = jnp.dtype(x.dtype).itemsize

    # Generation-aware budgets (v7x: 64 MiB VMEM per TC; v5e/v6e: 128 MiB).
    try:
        vmem_cap = getattr(pltpu.get_tpu_info(), "vmem_capacity_bytes", None)
    except Exception:
        vmem_cap = None
    if vmem_cap is None:
        vmem_cap = 64 * 1024 * 1024  # conservative (v7x-class) fallback
    if vmem_cap <= 64 * 1024 * 1024:
        default_budget, default_limit = 4 * 1024 * 1024, 36 * 1024 * 1024
    else:
        default_budget, default_limit = 8 * 1024 * 1024, 48 * 1024 * 1024
    block_budget_bytes = block_budget_bytes or default_budget
    vmem_limit_bytes = vmem_limit_bytes or default_limit

    # Lane-dense spatial axis; sublane-multiple rows with >= 2 blocks of work.
    Lp = max(128, _round_up(L, 128))
    Rp = max(16, _round_up(R, 8))

    x2 = x.reshape(R, L)
    if (Rp, Lp) != (R, L):
        x2 = jnp.pad(x2, ((0, Rp - R), (0, Lp - L)))  # zeros: exact for sum-of-squares

    # Per-row gamma/beta (row r <-> channel r % C); tiny vs. the main traffic.
    gamma_rows = jnp.broadcast_to(gamma.reshape(1, C), (N, C)).reshape(R, 1)
    beta_rows = jnp.broadcast_to(beta.reshape(1, C), (N, C)).reshape(R, 1)
    if Rp != R:
        gamma_rows = jnp.pad(gamma_rows, ((0, Rp - R), (0, 0)))
        beta_rows = jnp.pad(beta_rows, ((0, Rp - R), (0, 0)))

    # Rows per block: 2x double-buffered input + 2x output copies + f32 temps.
    bytes_per_row = Lp * (4 * itemsize + 8)
    tr = max(8, (block_budget_bytes // bytes_per_row) // 8 * 8)
    # Keep the grid at >= 2 steps so megacore / pipelining engage.
    tr = min(tr, max(8, (Rp // 2) // 8 * 8))
    tr = min(tr, Rp)
    grid = (pl.cdiv(Rp, tr),)

    cost = pl.CostEstimate(
        flops=4 * Rp * Lp,                  # square + reduce-add + mul + add
        transcendentals=Rp,                 # sqrt per row
        bytes_accessed=2 * Rp * Lp * itemsize + 8 * Rp,
    )

    out = pl.pallas_call(
        grn_kernel,
        out_shape=jax.ShapeDtypeStruct((Rp, Lp), x.dtype),
        grid=grid,
        in_specs=[
            pl.BlockSpec((tr, Lp), lambda i: (i, 0)),
            pl.BlockSpec((tr, 1), lambda i: (i, 0)),
            pl.BlockSpec((tr, 1), lambda i: (i, 0)),
        ],
        out_specs=pl.BlockSpec((tr, Lp), lambda i: (i, 0)),
        compiler_params=pltpu.CompilerParams(
            dimension_semantics=("parallel",),   # rows independent -> megacore
            vmem_limit_bytes=vmem_limit_bytes,
        ),
        cost_estimate=cost,
    )(x2, gamma_rows, beta_rows)

    return out[:R, :L].reshape(N, C, H, W)


def grn_reference(x, gamma, beta):
    """Pure-JAX reference mirroring the PyTorch module exactly."""
    gx = jnp.sqrt(jnp.sum(x * x, axis=(-2, -1), keepdims=True))      # (N, C, 1, 1)
    nx = gx / (jnp.mean(gx, axis=-1, keepdims=True) + 1e-6)
    return gamma * (x * nx) + beta + x


if __name__ == "__main__":
    key = jax.random.PRNGKey(0)
    kx, kg, kb, kx2 = jax.random.split(key, 4)

    # Shapes consistent with the module: x = torch.rand((2, dim, 32, 32)), dim=3.
    N, C, H, W = 2, 3, 32, 32
    x = jax.random.uniform(kx, (N, C, H, W), dtype=jnp.float32)
    # The module initializes gamma/beta to zeros (forward would be the identity);
    # use small nonzero values so the kernel's compute path is actually exercised.
    gamma = jax.random.normal(kg, (1, C, 1, 1), dtype=jnp.float32) * 0.1
    beta = jax.random.normal(kb, (1, C, 1, 1), dtype=jnp.float32) * 0.1

    out = jax.block_until_ready(grn_forward(x, gamma, beta))
    ref = grn_reference(x, gamma, beta)
    assert out.shape == (N, C, H, W)
    assert jnp.allclose(out, ref, atol=1e-5, rtol=1e-5), "mismatch vs reference"

    # Also exercise the lane-padding path (H*W = 49, not a multiple of 128).
    x_small = jax.random.uniform(kx2, (2, 3, 7, 7), dtype=jnp.float32)
    out_small = jax.block_until_ready(grn_forward(x_small, gamma, beta))
    ref_small = grn_reference(x_small, gamma, beta)
    assert jnp.allclose(out_small, ref_small, atol=1e-5, rtol=1e-5), "mismatch (padded L)"

    print("KERNEL_OK")
</pallas_src>

<mosaic_0001>
module attributes {stable_mosaic.version = 11 : i64} {
  func.func @grn_kernel(%arg0: i32, %arg1: memref<8x1024xf32, #tpu.memory_space<vmem>>, %arg2: memref<8x1xf32, #tpu.memory_space<vmem>>, %arg3: memref<8x1xf32, #tpu.memory_space<vmem>>, %arg4: memref<8x1024xf32, #tpu.memory_space<vmem>>) attributes {dimension_semantics = [#tpu.dimension_semantics<parallel>], iteration_bounds = array<i64: 2>, scalar_prefetch = 0 : i64, scratch_operands = 0 : i64, tpu.core_type = #tpu.core_type<tc>, window_params = [{transform_indices = @transform_0, window_bounds = array<i64: 8, 1024>}, {transform_indices = @transform_1, window_bounds = array<i64: 8, 1>}, {transform_indices = @transform_2, window_bounds = array<i64: 8, 1>}, {transform_indices = @transform_3, window_bounds = array<i64: 8, 1024>}]} {
    %c0 = arith.constant 0 : index
    %c0_0 = arith.constant 0 : index
    %0 = vector.load %arg1[%c0, %c0_0] : memref<8x1024xf32, #tpu.memory_space<vmem>>, vector<8x1024xf32>
    %1 = arith.mulf %0, %0 : vector<8x1024xf32>
    %cst = arith.constant dense<0.000000e+00> : vector<8xf32>
    %2 = vector.multi_reduction <add>, %1, %cst [1] : vector<8x1024xf32> to vector<8xf32>
    %3 = vector.shape_cast %2 : vector<8xf32> to vector<8x1xf32>
    %4 = math.sqrt %3 : vector<8x1xf32>
    %cst_1 = arith.constant 9.99999997E-7 : f32
    %5 = vector.broadcast %cst_1 : f32 to vector<8x1xf32>
    %6 = arith.addf %4, %5 : vector<8x1xf32>
    %7 = arith.divf %4, %6 : vector<8x1xf32>
    %c0_2 = arith.constant 0 : index
    %c0_3 = arith.constant 0 : index
    %8 = vector.load %arg2[%c0_2, %c0_3] : memref<8x1xf32, #tpu.memory_space<vmem>>, vector<8x1xf32>
    %9 = arith.mulf %8, %7 : vector<8x1xf32>
    %cst_4 = arith.constant 1.000000e+00 : f32
    %10 = vector.broadcast %cst_4 : f32 to vector<8x1xf32>
    %11 = arith.addf %9, %10 : vector<8x1xf32>
    %c0_5 = arith.constant 0 : index
    %c0_6 = arith.constant 0 : index
    %12 = vector.load %arg3[%c0_5, %c0_6] : memref<8x1xf32, #tpu.memory_space<vmem>>, vector<8x1xf32>
    %c0_7 = arith.constant 0 : index
    %c0_8 = arith.constant 0 : index
    %13 = vector.load %arg1[%c0_7, %c0_8] : memref<8x1024xf32, #tpu.memory_space<vmem>>, vector<8x1024xf32>
    %14 = vector.broadcast %11 : vector<8x1xf32> to vector<8x1024xf32>
    %15 = arith.mulf %13, %14 : vector<8x1024xf32>
    %16 = vector.broadcast %12 : vector<8x1xf32> to vector<8x1024xf32>
    %17 = arith.addf %15, %16 : vector<8x1024xf32>
    %c0_9 = arith.constant 0 : index
    %c0_10 = arith.constant 0 : index
    %18 = vector.load %arg4[%c0_9, %c0_10] : memref<8x1024xf32, #tpu.memory_space<vmem>>, vector<8x1024xf32>
    tpu.vector_store %arg4[%c0_9, %c0_10], %17 {strides = array<i32>} : memref<8x1024xf32, #tpu.memory_space<vmem>>, vector<8x1024xf32>,
    return
  }
  func.func @transform_0(%arg0: i32) -> (i32, i32) {
    %c0_i32 = arith.constant 0 : i32
    %c0_i32_0 = arith.constant 0 : i32
    return %arg0, %c0_i32 : i32, i32
  }
  func.func @transform_1(%arg0: i32) -> (i32, i32) {
    %c0_i32 = arith.constant 0 : i32
    %c0_i32_0 = arith.constant 0 : i32
    return %arg0, %c0_i32 : i32, i32
  }
  func.func @transform_2(%arg0: i32) -> (i32, i32) {
    %c0_i32 = arith.constant 0 : i32
    %c0_i32_0 = arith.constant 0 : i32
    return %arg0, %c0_i32 : i32, i32
  }
  func.func @transform_3(%arg0: i32) -> (i32, i32) {
    %c0_i32 = arith.constant 0 : i32
    %c0_i32_0 = arith.constant 0 : i32
    return %arg0, %c0_i32 : i32, i32
  }
}

</mosaic_0001>

<llo_original>
// kernel: tpu_custom_call.1
$region0: #{tpu_custom_call.1}
  #allocation0 [shape = 'u32[]', space=smem, size = 0x4, offset = 0x4, fixed_abs, tag = 'smem constant byte address 0x4 - core index']
  #allocation1 [shape = 'u32[144,128]{1,0:T(1,128)}', space=vmem, size = 0x12000, scoped, tag = 'internal scratch']
  %s0 = inlined_call_operand.hbm [shape: f32[16,1024], index: 0, kind: input, shape index: {}]
  %s1 = inlined_call_operand.vmem [shape: f32[16,1], index: 1, kind: input, shape index: {}]
  %s2 = inlined_call_operand.vmem [shape: f32[16,1], index: 2, kind: input, shape index: {}]
  %s3 = inlined_call_operand.hbm [shape: f32[16,1024], index: 3, kind: output, shape index: {}]
  %s4 = sld [smem:[#allocation0]]
  $region49: #{tpu_custom_call.1} parent=0
    _
  %s6 = ssub.s32 1, %s4
  %s7 = scalar_select 0, %s6, %s4
  $region1: #{tpu_custom_call.1} parent=0
    #allocation2 [shape = 'u8[65536]{0}', space=vmem, size = 0x10000, scoped, tag = 'input window, operand 0']
    #allocation3 [shape = 's32[2]{0}', space=sflag, size = 0x8, scoped, tag = 'scoped memory for tpu_custom_call.1']
    #allocation4 [shape = 's32[2]{0}', space=sflag, size = 0x8, scoped, tag = 'scoped memory for tpu_custom_call.1']
    #allocation5 [shape = 'u8[65536]{0}', space=vmem, size = 0x10000, scoped, tag = 'output window, operand 0']
    %8 = vsyncpa [#allocation3], 0
    %s9 = scalar_lea.sflag [#allocation3], 1
    %10 = vsyncpa %s9, 0
    %11 = vsyncpa [#allocation4], 0
    %s12 = scalar_lea.sflag [#allocation4], 1
    %13 = vsyncpa %s12, 0
    loop: start=0, step=1, limit=4
    $region2: #{tpu_custom_call.1} parent=1 // loop_pre_header
      _
    $region3: #{tpu_custom_call.1} parent=1 // loop_header
      %s15 = sphi 0, %s19
      %p16 = scmp.ge.s32.totalorder %s15, 4
      %s25 = sphi 0, %s27
      %s28 = sphi 0, %s25
      %s29 = sphi 0, %s28
      %s45 = sphi 0, %s29
      %s51 = sphi 0, %s53
      %s54 = sphi 0, %s51
      %s55 = sphi 0, %s54
      %s71 = sphi 0, %s55
      %s77 = sphi 0, %s79
      %s80 = sphi 0, %s77
      %s81 = sphi 0, %s80
      %s97 = sphi 0, %s81
      %s103 = sphi 0, %s105
      %s106 = sphi 0, %s103
      %s107 = sphi 0, %s106
      %s123 = sphi 0, %s107
    $region4: #{tpu_custom_call.1} parent=1 // loop_header_branch
      %18 = sbr.rel (%p16) target = $region8
    $region5: #{tpu_custom_call.1} parent=1 // loop_body
      %s20 = ssub.s32 %s15, 1
      %s21 = ssub.s32 %s15, 2
      %s22 = sadd.s32 %s15, 1
      %s23 = ssub.s32 %s15, %s22
      %p24 = scmp.eq.s32.totalorder %s23, 0
      %s26 = sadd.s32 %s25, 1
      %s27 = scalar_select %p24, %s25, %s26
      %p30 = pneg %p24
      %p31 = scmp.eq.s32.totalorder %s15, 1
      %p32 = por %p30, %p31
      %p33 = scmp.ne.s32.totalorder %s25, %s28
      %p34 = scmp.eq.s32.totalorder %s15, 0
      %p35 = por %p33, %p34
      %p36 = scmp.ne.s32.totalorder %s25, %s28
      %p37 = scmp.eq.s32.totalorder %s20, 1
      %p38 = por %p36, %p37
      %p39 = scmp.ne.s32.totalorder %s28, %s29
      %p40 = scmp.eq.s32.totalorder %s20, 0
      %p41 = por %p39, %p40
      %p42 = scmp.ne.s32.totalorder %s28, %s29
      %p43 = scmp.eq.s32.totalorder %s21, 1
      %p44 = por %p42, %p43
      %p46 = scmp.ne.s32.totalorder %s29, %s45
      %p47 = scmp.eq.s32.totalorder %s21, 0
      %p48 = por %p46, %p47
      %s49 = ssub.s32 %s15, %s22
      %p50 = scmp.eq.s32.totalorder %s49, 0
      %s52 = sadd.s32 %s51, 1
      %s53 = scalar_select %p50, %s51, %s52
      %p56 = pneg %p50
      %p57 = scmp.eq.s32.totalorder %s15, 1
      %p58 = por %p56, %p57
      %p59 = scmp.ne.s32.totalorder %s51, %s54
      %p60 = scmp.eq.s32.totalorder %s15, 0
      %p61 = por %p59, %p60
      %p62 = scmp.ne.s32.totalorder %s51, %s54
      %p63 = scmp.eq.s32.totalorder %s20, 1
      %p64 = por %p62, %p63
      %p65 = scmp.ne.s32.totalorder %s54, %s55
      %p66 = scmp.eq.s32.totalorder %s20, 0
      %p67 = por %p65, %p66
      %p68 = scmp.ne.s32.totalorder %s54, %s55
      %p69 = scmp.eq.s32.totalorder %s21, 1
      %p70 = por %p68, %p69
      %p72 = scmp.ne.s32.totalorder %s55, %s71
      %p73 = scmp.eq.s32.totalorder %s21, 0
      %p74 = por %p72, %p73
      %s75 = ssub.s32 %s15, %s22
      %p76 = scmp.eq.s32.totalorder %s75, 0
      %s78 = sadd.s32 %s77, 1
      %s79 = scalar_select %p76, %s77, %s78
      %p82 = pneg %p76
      %p83 = scmp.eq.s32.totalorder %s15, 1
      %p84 = por %p82, %p83
      %p85 = scmp.ne.s32.totalorder %s77, %s80
      %p86 = scmp.eq.s32.totalorder %s15, 0
      %p87 = por %p85, %p86
      %p88 = scmp.ne.s32.totalorder %s77, %s80
      %p89 = scmp.eq.s32.totalorder %s20, 1
      %p90 = por %p88, %p89
      %p91 = scmp.ne.s32.totalorder %s80, %s81
      %p92 = scmp.eq.s32.totalorder %s20, 0
      %p93 = por %p91, %p92
      %p94 = scmp.ne.s32.totalorder %s80, %s81
      %p95 = scmp.eq.s32.totalorder %s21, 1
      %p96 = por %p94, %p95
      %p98 = scmp.ne.s32.totalorder %s81, %s97
      %p99 = scmp.eq.s32.totalorder %s21, 0
      %p100 = por %p98, %p99
      %s101 = ssub.s32 %s15, %s22
      %p102 = scmp.eq.s32.totalorder %s101, 0
      %s104 = sadd.s32 %s103, 1
      %s105 = scalar_select %p102, %s103, %s104
      %p108 = pneg %p102
      %p109 = scmp.eq.s32.totalorder %s15, 1
      %p110 = por %p108, %p109
      %p111 = scmp.ne.s32.totalorder %s103, %s106
      %p112 = scmp.eq.s32.totalorder %s15, 0
      %p113 = por %p111, %p112
      %p114 = scmp.ne.s32.totalorder %s103, %s106
      %p115 = scmp.eq.s32.totalorder %s20, 1
      %p116 = por %p114, %p115
      %p117 = scmp.ne.s32.totalorder %s106, %s107
      %p118 = scmp.eq.s32.totalorder %s20, 0
      %p119 = por %p117, %p118
      %p120 = scmp.ne.s32.totalorder %s106, %s107
      %p121 = scmp.eq.s32.totalorder %s21, 1
      %p122 = por %p120, %p121
      %p124 = scmp.ne.s32.totalorder %s107, %s123
      %p125 = scmp.eq.s32.totalorder %s21, 0
      %p126 = por %p124, %p125
      %p127 = scmp.le.s32.totalorder 1, %s15
      %p128 = scmp.lt.s32.totalorder %s15, 3
      %p129 = pnand %p127, %p128
      %p130 = pneg %p129
      // Predicated region
      $region9: #{tpu_custom_call.1} parent=5 // pred_check
        _
      $region10: #{tpu_custom_call.1} parent=5 // pred_check_branch
        %132 = sbr.rel (%p129) target = $region12
      $region11: #{tpu_custom_call.1} parent=5 // pred_region
        %s133 = ssub.s32 %s15, 1
      $region12: #{tpu_custom_call.1} parent=5 // pred_fallthru
        _
      %p134 = scmp.lt.s32.totalorder %s15, 2
      // Predicated region
      $region13: #{tpu_custom_call.1} parent=5 // pred_check
        %p135 = pneg %p134
      $region14: #{tpu_custom_call.1} parent=5 // pred_check_branch
        %137 = sbr.rel (%p135) target = $region16
      $region15: #{tpu_custom_call.1} parent=5 // pred_region
        // Predicated region
        $region17: #{tpu_custom_call.1} parent=15 // pred_check
          %p138 = pneg %p35
        $region18: #{tpu_custom_call.1} parent=15 // pred_check_branch
          %140 = sbr.rel (%p138) target = $region20
        $region19: #{tpu_custom_call.1} parent=15 // pred_region
          %s141 = sand.u32 %s25, 1
          %s142 = scalar_lea.sflag [#allocation3], %s141
          %s143 = sand.u32 %s25, 1
          %s144 = smul.addr %s143, 64
          %s145 = scalar_lea.vmem [#allocation2], %s144
          %s147 = ssub.s32 1024, 1024
          %148 = vsyncadd %s142, %s147
          %s149 = smul.addr %s15, 8
          %s150 = smul.addr %s149, 128
          %s151 = scalar_lea.hbm %s0, %s150
          %s153 = sshll.u32 %s145, 4
          %s154 = int_to_ptr.vmem [resolvable:$true] %s153
          %156 = dma.hbm_to_vmem [thread:$0]  %s151, 1024, %s154, %s142
        $region20: #{tpu_custom_call.1} parent=15 // pred_fallthru
          _
        // Predicated region
        $region21: #{tpu_custom_call.1} parent=15 // pred_check
          %p157 = pneg %p61
        $region22: #{tpu_custom_call.1} parent=15 // pred_check_branch
          %159 = sbr.rel (%p157) target = $region24
        $region23: #{tpu_custom_call.1} parent=15 // pred_region
          %p160 = scmp.lt.s32.totalorder %s15, 1
          %s161 = scalar_select %p160, %s15, 1
          %s162 = smul.addr %s161, 8
          %s163 = scalar_lea.vmem %s1, %s162
        $region24: #{tpu_custom_call.1} parent=15 // pred_fallthru
          _
        // Predicated region
        $region25: #{tpu_custom_call.1} parent=15 // pred_check
          %p164 = pneg %p87
        $region26: #{tpu_custom_call.1} parent=15 // pred_check_branch
          %166 = sbr.rel (%p164) target = $region28
        $region27: #{tpu_custom_call.1} parent=15 // pred_region
          %p167 = scmp.lt.s32.totalorder %s15, 1
          %s168 = scalar_select %p167, %s15, 1
          %s169 = smul.addr %s168, 8
          %s170 = scalar_lea.vmem %s2, %s169
        $region28: #{tpu_custom_call.1} parent=15 // pred_fallthru
          _
      $region16: #{tpu_custom_call.1} parent=5 // pred_fallthru
        _
      %p171 = scmp.le.s32.totalorder 1, %s15
      %p172 = scmp.lt.s32.totalorder %s15, 3
      %p173 = pnand %p171, %p172
      %p174 = pneg %p173
      // Predicated region
      $region29: #{tpu_custom_call.1} parent=5 // pred_check
        _
      $region30: #{tpu_custom_call.1} parent=5 // pred_check_branch
        %176 = sbr.rel (%p173) target = $region32
      $region31: #{tpu_custom_call.1} parent=5 // pred_region
        %s177 = ssub.s32 %s15, 1
        %s178 = sand.u32 %s28, 1
        %s179 = scalar_lea.sflag [#allocation3], %s178
        %s180 = sand.u32 %s28, 1
        %s181 = smul.addr %s180, 64
        %s182 = scalar_lea.vmem [#allocation2], %s181
        // Predicated region
        $region33: #{tpu_custom_call.1} parent=31 // pred_check
          %p183 = pneg %p41
        $region34: #{tpu_custom_call.1} parent=31 // pred_check_branch
          %185 = sbr.rel (%p183) target = $region36
        $region35: #{tpu_custom_call.1} parent=31 // pred_region
          %186 = dma.done %s179, 1024
        $region36: #{tpu_custom_call.1} parent=31 // pred_fallthru
          _
        %s187 = sand.u32 %s28, 1
        %s188 = scalar_lea.sflag [#allocation3], %s187
        %s189 = sand.u32 %s28, 1
        %s190 = smul.addr %s189, 64
        %s191 = scalar_lea.vmem [#allocation2], %s190
        %p192 = pneg %p41
        %p193 = pneg %p38
        %p194 = scmp.lt.s32.totalorder %s20, 1
        %s195 = scalar_select %p194, %s20, 1
        %s196 = smul.addr %s195, 8
        %s197 = scalar_lea.vmem %s1, %s196
        %p198 = pneg %p67
        %p199 = pneg %p64
        %p200 = scmp.lt.s32.totalorder %s20, 1
        %s201 = scalar_select %p200, %s20, 1
        %s202 = smul.addr %s201, 8
        %s203 = scalar_lea.vmem %s2, %s202
        %p204 = pneg %p93
        %p205 = pneg %p90
        %p206 = pneg %p119
        %p207 = pneg %p116
        %s208 = sand.u32 %s106, 1
        %s209 = scalar_lea.sflag [#allocation4], %s208
        %s210 = sand.u32 %s106, 1
        %s211 = smul.addr %s210, 64
        %s212 = scalar_lea.vmem [#allocation5], %s211
        %p213 = scmp.lt.s32.totalorder %s20, 1
        %s214 = scalar_select %p213, %s20, 1
        %s215 = smul.addr %s214, 8
        %s216 = scalar_lea.vmem %s1, %s215
        %p217 = scmp.lt.s32.totalorder %s20, 1
        %s218 = scalar_select %p217, %s20, 1
        %s219 = smul.addr %s218, 8
        %s220 = scalar_lea.vmem %s2, %s219
        %v221 = vld [vmem:[%s182] sm:$0xff]
        %v222 = vld [vmem:[%s182 + $0x8] sm:$0xff]
        %v223 = vld [vmem:[%s182 + $0x10] sm:$0xff]
        %v224 = vld [vmem:[%s182 + $0x18] sm:$0xff]
        %v225 = vld [vmem:[%s182 + $0x20] sm:$0xff]
        %v226 = vld [vmem:[%s182 + $0x28] sm:$0xff]
        %v227 = vld [vmem:[%s182 + $0x30] sm:$0xff]
        %v228 = vld [vmem:[%s182 + $0x38] sm:$0xff]
        %v229 = vmul.f32 %v221, %v221
        %v230 = vmul.f32 %v222, %v222
        %v231 = vmul.f32 %v223, %v223
        %v232 = vmul.f32 %v224, %v224
        %v233 = vmul.f32 %v225, %v225
        %v234 = vmul.f32 %v226, %v226
        %v235 = vmul.f32 %v227, %v227
        %v236 = vmul.f32 %v228, %v228
        %v237 = vadd.f32 %v229, %v230
        %v238 = vadd.f32 %v237, %v231
        %v239 = vadd.f32 %v238, %v232
        %v240 = vadd.f32 %v239, %v233
        %v241 = vadd.f32 %v240, %v234
        %v242 = vadd.f32 %v241, %v235
        %v243 = vadd.f32 %v242, %v236
        %244 = vadd.xlane.f32.xlu0 %v243
        %v245 = vpop.xlane.xlu0 %244
        %v246 = vrsqrt.pop %v245
        %v247 = vmul.f32 %v245, %v246
        %vm248 = vcmp.eq.f32.partialorder %v245, inf
        %v249 = vsel %vm248, %v245, %v247
        %vm250 = vcmp.eq.f32.partialorder %v245, 0.0
        %v251 = vand.u32 %v245, 2147483648
        %v252 = vsel %vm250, %v251, %v249
        %v253 = vadd.f32 %v252, 1e-06
        %v254 = vrcp.pop %v253
        %v255 = vmul.f32 %v252, %v254
        %v256 = vld [vmem:[%s216] sm:$0xff]
        %v257 = vmul.f32 %v256, %v255
        %v258 = vadd.f32 %v257, 1.0
        %v259 = vld [vmem:[%s220] sm:$0xff]
        %261 = vset.pattern.permute.xlu0 0
        %262 = vperm.xlu0 %261, %v258
        %v263 = vpop.permute.xlu0 %262
        %v265 = vmul.f32 %v221, %v263
        %v266 = vmul.f32 %v222, %v263
        %v267 = vmul.f32 %v223, %v263
        %v268 = vmul.f32 %v224, %v263
        %v269 = vmul.f32 %v225, %v263
        %v270 = vmul.f32 %v226, %v263
        %v271 = vmul.f32 %v227, %v263
        %v272 = vmul.f32 %v228, %v263
        %274 = vset.pattern.permute.xlu0 0
        %275 = vperm.xlu0 %274, %v259
        %v276 = vpop.permute.xlu0 %275
        %v278 = vadd.f32 %v265, %v276
        %v279 = vadd.f32 %v266, %v276
        %v280 = vadd.f32 %v267, %v276
        %v281 = vadd.f32 %v268, %v276
        %v282 = vadd.f32 %v269, %v276
        %v283 = vadd.f32 %v270, %v276
        %v284 = vadd.f32 %v271, %v276
        %v285 = vadd.f32 %v272, %v276
        %286 = vst [vmem:[%s212] sm:$0xff] %v278
        %287 = vst [vmem:[%s212 + $0x8] sm:$0xff] %v279
        %288 = vst [vmem:[%s212 + $0x10] sm:$0xff] %v280
        %289 = vst [vmem:[%s212 + $0x18] sm:$0xff] %v281
        %290 = vst [vmem:[%s212 + $0x20] sm:$0xff] %v282
        %291 = vst [vmem:[%s212 + $0x28] sm:$0xff] %v283
        %292 = vst [vmem:[%s212 + $0x30] sm:$0xff] %v284
        %293 = vst [vmem:[%s212 + $0x38] sm:$0xff] %v285
        %s294 = sand.u32 %s106, 1
        %s295 = scalar_lea.sflag [#allocation4], %s294
        %s296 = sand.u32 %s106, 1
        %s297 = smul.addr %s296, 64
        %s298 = scalar_lea.vmem [#allocation5], %s297
        // Predicated region
        $region37: #{tpu_custom_call.1} parent=31 // pred_check
          %p299 = pneg %p116
        $region38: #{tpu_custom_call.1} parent=31 // pred_check_branch
          %301 = sbr.rel (%p299) target = $region40
        $region39: #{tpu_custom_call.1} parent=31 // pred_region
          %s303 = ssub.s32 1024, 1024
          %304 = vsyncadd %s295, %s303
          %s305 = smul.addr %s20, 8
          %s306 = smul.addr %s305, 128
          %s307 = scalar_lea.hbm %s3, %s306
          %s309 = sshll.u32 %s298, 4
          %s310 = int_to_ptr.vmem [resolvable:$true] %s309
          %312 = dma.vmem_to_hbm [thread:$0]  %s310, 1024, %s307, %s295
        $region40: #{tpu_custom_call.1} parent=31 // pred_fallthru
          _
      $region32: #{tpu_custom_call.1} parent=5 // pred_fallthru
        _
      %p313 = scmp.le.s32.totalorder 2, %s15
      // Predicated region
      $region41: #{tpu_custom_call.1} parent=5 // pred_check
        %p314 = pneg %p313
      $region42: #{tpu_custom_call.1} parent=5 // pred_check_branch
        %316 = sbr.rel (%p314) target = $region44
      $region43: #{tpu_custom_call.1} parent=5 // pred_region
        %s317 = ssub.s32 %s15, 2
        // Predicated region
        $region45: #{tpu_custom_call.1} parent=43 // pred_check
          %p318 = pneg %p122
        $region46: #{tpu_custom_call.1} parent=43 // pred_check_branch
          %320 = sbr.rel (%p318) target = $region48
        $region47: #{tpu_custom_call.1} parent=43 // pred_region
          %s321 = sand.u32 %s107, 1
          %s322 = scalar_lea.sflag [#allocation4], %s321
          %s323 = sand.u32 %s107, 1
          %s324 = smul.addr %s323, 64
          %s325 = scalar_lea.vmem [#allocation5], %s324
          %326 = dma.done %s322, 1024
        $region48: #{tpu_custom_call.1} parent=43 // pred_fallthru
          _
      $region44: #{tpu_custom_call.1} parent=5 // pred_fallthru
        _
    $region6: #{tpu_custom_call.1} parent=1 // loop_footer
      %s19 = sadd.s32 1, %s15
    $region7: #{tpu_custom_call.1} parent=1 // loop_footer_branch
      %14 = sbr.rel target = $region3
    $region8: #{tpu_custom_call.1} parent=1 // loop_exit
      _
    %327 = vsyncpa [#allocation3], 1
    %s328 = scalar_lea.sflag [#allocation3], 1
    %329 = vsyncpa %s328, 1
    %330 = vsyncpa [#allocation4], 1
    %s331 = scalar_lea.sflag [#allocation4], 1
    %332 = vsyncpa %s331, 1

</llo_original>
